<compile_context>
chip_gen: v7x
topology: tpu7x:2x2x1
jax: 0.10.0
libtpu: 0.0.40
codegen_flags: <defaults>
</compile_context>

<pallas_src>
import functools

import jax
import jax.numpy as jnp
from jax import lax
from jax.experimental import pallas as pl
from jax.experimental.pallas import tpu as pltpu


def _dual_cross_attn_kernel(x_ref, y_ref, w_in_ref, w_out_ref, out_ref, *, cross):
    """Both CrossAttention heads + seq-axis concat for ALL batch elements.

    head_a: query = x, context = (y if cross else x)
    head_b: query = y, context = (x if cross else y)
    out_ref[b] = cat(head_a_out[b], head_b_out[b], axis=0)     # (Lx+Ly, D)

    Weights are pre-packed block-diagonally so linear_in / linear_out each
    cover both heads with a single MXU pass.
    """
    B, Lx, D = x_ref.shape
    Ly = y_ref.shape[1]
    Lq = max(Lx, Ly)
    f32 = jnp.float32

    w_in = w_in_ref[...]      # (2D, 2D) block-diag [W_in_a, W_in_b]
    w_out = w_out_ref[...]    # (4D, 2D) block-diag [W_out_a, W_out_b]

    def attend(qp_h, c):
        # attention_weights = softmax(qp_h @ c^T); returns mix = weights @ c.
        # (attention weights themselves are discarded by MultiEncoder.forward,
        #  so they are never written to HBM.)
        s = lax.dot_general(qp_h, c, (((1,), (1,)), ((), ())),
                            preferred_element_type=f32)            # (Lq, Lc)
        m = jnp.max(s, axis=-1, keepdims=True)
        e = jnp.exp(s - m)
        w = e / jnp.sum(e, axis=-1, keepdims=True)                 # exact softmax
        return jnp.dot(w, c, preferred_element_type=f32)           # (Lq, D)

    for b in range(B):                        # B is tiny & static -> unrolled
        qx = x_ref[b].astype(f32)             # (Lx, D)  head_a query
        qy = y_ref[b].astype(f32)             # (Ly, D)  head_b query
        ca = qy if cross else qx              # head_a context (register reuse)
        cb = qx if cross else qy              # head_b context

        # Zero-pad both queries to Lq rows and lane-pack heads: [q_a | q_b].
        qx_p = qx if Lx == Lq else jnp.concatenate(
            [qx, jnp.zeros((Lq - Lx, D), f32)], axis=0)
        qy_p = qy if Ly == Lq else jnp.concatenate(
            [qy, jnp.zeros((Lq - Ly, D), f32)], axis=0)
        q_pack = jnp.concatenate([qx_p, qy_p], axis=-1)            # (Lq, 2D)

        # linear_in for both heads: ONE matmul against block-diag weights.
        qp = jnp.dot(q_pack, w_in, preferred_element_type=f32)     # (Lq, 2D)
        qp_a = qp[:, :D]
        qp_b = qp[:, D:]

        mix_a = attend(qp_a, ca)                                   # (Lq, D)
        mix_b = attend(qp_b, cb)                                   # (Lq, D)

        # cat((mix, query), -1) for both heads lives in one 128-lane vreg;
        # linear_out for both heads is again ONE matmul (K=4D=128, N=2D=64).
        comb = jnp.concatenate([mix_a, qp_a, mix_b, qp_b], axis=-1)      # (Lq, 4D)
        out = jnp.tanh(jnp.dot(comb, w_out, preferred_element_type=f32))  # (Lq, 2D)

        # Sequence-axis concat of the two heads' valid rows; single store.
        fused_b = jnp.concatenate([out[:Lx, :D], out[:Ly, D:]], axis=0)  # (Lx+Ly, D)
        out_ref[b] = fused_b.astype(out_ref.dtype)


def _block_diag(a, b):
    ra, ca = a.shape
    rb, cb = b.shape
    top = jnp.concatenate([a, jnp.zeros((ra, cb), a.dtype)], axis=1)
    bot = jnp.concatenate([jnp.zeros((rb, ca), b.dtype), b], axis=1)
    return jnp.concatenate([top, bot], axis=0)


def fused_dual_cross_attention(x, y, w_in_a_t, w_out_a_t, w_in_b_t, w_out_b_t,
                               *, cross):
    """cat(head_a(q=x, c=y|x), head_b(q=y, c=x|y), axis=1) in one pallas_call.

    Linear weights are stored pre-transposed ((in_features, out_features)) and
    packed block-diagonally so each linear layer covers both heads at once.
    """
    B, Lx, D = x.shape
    Ly = y.shape[1]

    w_in_packed = _block_diag(w_in_a_t, w_in_b_t)      # (2D, 2D)
    w_out_packed = _block_diag(w_out_a_t, w_out_b_t)   # (4D, 2D)

    kernel = functools.partial(_dual_cross_attn_kernel, cross=cross)
    vmem = pl.BlockSpec(memory_space=pltpu.MemorySpace.VMEM)
    return pl.pallas_call(
        kernel,
        out_shape=jax.ShapeDtypeStruct((B, Lx + Ly, D), x.dtype),
        in_specs=[vmem, vmem, vmem, vmem],
        out_specs=vmem,
    )(x, y, w_in_packed, w_out_packed)


def init_multi_encoder_params(key, hidden_size):
    """Deterministic weights for the two CrossAttention heads."""
    ks = jax.random.split(key, 4)
    scale = 1.0 / jnp.sqrt(hidden_size)
    # stored pre-transposed: (in_features, out_features)
    return {
        "alpha_w_in_t": jax.random.uniform(ks[0], (hidden_size, hidden_size),
                                           jnp.float32, -scale, scale),
        "alpha_w_out_t": jax.random.uniform(ks[1], (2 * hidden_size, hidden_size),
                                            jnp.float32, -scale, scale),
        "beta_w_in_t": jax.random.uniform(ks[2], (hidden_size, hidden_size),
                                          jnp.float32, -scale, scale),
        "beta_w_out_t": jax.random.uniform(ks[3], (2 * hidden_size, hidden_size),
                                           jnp.float32, -scale, scale),
    }


def multi_encoder_forward(kpi_re, log_re, params, fuse_type="cross_attn"):
    """MultiEncoder.forward fusion stage (encoder outputs taken as inputs)."""
    if fuse_type == "cross_attn":
        # cat(attn_alpha(query=log, context=kpi), attn_beta(query=kpi, context=log))
        fused = fused_dual_cross_attention(
            log_re, kpi_re,
            params["alpha_w_in_t"], params["alpha_w_out_t"],
            params["beta_w_in_t"], params["beta_w_out_t"],
            cross=True)
    elif fuse_type == "sep_attn":
        # cat(attn_alpha(query=kpi, context=kpi), attn_beta(query=log, context=log))
        fused = fused_dual_cross_attention(
            kpi_re, log_re,
            params["alpha_w_in_t"], params["alpha_w_out_t"],
            params["beta_w_in_t"], params["beta_w_out_t"],
            cross=False)
    elif fuse_type == "concat":
        fused = jnp.concatenate([kpi_re, log_re], axis=1)
    else:
        fused = None
    return fused, (kpi_re, log_re)


def _cross_attention_ref(query, context, w_in_t, w_out_t):
    """Pure-JAX reference mirroring the PyTorch CrossAttention."""
    q = jnp.einsum("bld,de->ble", query, w_in_t)
    scores = jnp.einsum("bld,bkd->blk", q, context)
    w = jax.nn.softmax(scores, axis=-1)
    mix = jnp.einsum("blk,bkd->bld", w, context)
    combined = jnp.concatenate([mix, q], axis=-1)
    out = jnp.tanh(jnp.einsum("blc,cd->bld", combined, w_out_t))
    return out, w


if __name__ == "__main__":
    B = 2
    HIDDEN = 32
    T_KPI = 10   # kpi_encoder output sequence length
    T_LOG = 8    # log_encoder output sequence length

    key = jax.random.PRNGKey(0)
    k_kpi, k_log, k_params = jax.random.split(key, 3)

    kpi_re = jax.random.normal(k_kpi, (B, T_KPI, HIDDEN), jnp.float32)
    log_re = jax.random.normal(k_log, (B, T_LOG, HIDDEN), jnp.float32)
    params = init_multi_encoder_params(k_params, HIDDEN)

    fwd = jax.jit(functools.partial(multi_encoder_forward, fuse_type="cross_attn"))
    fused, (kpi_out, log_out) = fwd(kpi_re, log_re, params)
    fused = jax.block_until_ready(fused)

    # sanity check against pure-JAX reference
    ref_alpha, _ = _cross_attention_ref(log_re, kpi_re,
                                        params["alpha_w_in_t"], params["alpha_w_out_t"])
    ref_beta, _ = _cross_attention_ref(kpi_re, log_re,
                                       params["beta_w_in_t"], params["beta_w_out_t"])
    ref_fused = jnp.concatenate([ref_alpha, ref_beta], axis=1)

    assert fused.shape == (B, T_LOG + T_KPI, HIDDEN), fused.shape
    # exact softmax in-kernel -> tight tolerance
    assert jnp.allclose(fused, ref_fused, atol=1e-4, rtol=1e-4), (
        float(jnp.max(jnp.abs(fused - ref_fused))))

    print("KERNEL_OK")
</pallas_src>

<mosaic_0001>
module attributes {stable_mosaic.version = 11 : i64} {
  func.func @_dual_cross_attn_kernel(%arg0: memref<2x8x32xf32, #tpu.memory_space<vmem>>, %arg1: memref<2x10x32xf32, #tpu.memory_space<vmem>>, %arg2: memref<64x64xf32, #tpu.memory_space<vmem>>, %arg3: memref<128x64xf32, #tpu.memory_space<vmem>>, %arg4: memref<2x18x32xf32, #tpu.memory_space<vmem>>) attributes {dimension_semantics = [], scalar_prefetch = 0 : i64, scratch_operands = 0 : i64, tpu.core_type = #tpu.core_type<tc>} {
    %c0 = arith.constant 0 : index
    %c0_0 = arith.constant 0 : index
    %0 = vector.load %arg2[%c0, %c0_0] : memref<64x64xf32, #tpu.memory_space<vmem>>, vector<64x64xf32>
    %c0_1 = arith.constant 0 : index
    %c0_2 = arith.constant 0 : index
    %1 = vector.load %arg3[%c0_1, %c0_2] : memref<128x64xf32, #tpu.memory_space<vmem>>, vector<128x64xf32>
    %c0_3 = arith.constant 0 : index
    %c0_4 = arith.constant 0 : index
    %c0_5 = arith.constant 0 : index
    %2 = vector.load %arg0[%c0_3, %c0_4, %c0_5] : memref<2x8x32xf32, #tpu.memory_space<vmem>>, vector<1x8x32xf32>
    %3 = vector.shape_cast %2 : vector<1x8x32xf32> to vector<8x32xf32>
    %c0_6 = arith.constant 0 : index
    %c0_7 = arith.constant 0 : index
    %c0_8 = arith.constant 0 : index
    %4 = vector.load %arg1[%c0_6, %c0_7, %c0_8] : memref<2x10x32xf32, #tpu.memory_space<vmem>>, vector<1x10x32xf32>
    %5 = vector.shape_cast %4 : vector<1x10x32xf32> to vector<10x32xf32>
    %cst = arith.constant 0.000000e+00 : f32
    %6 = vector.broadcast %cst : f32 to vector<2x32xf32>
    %7 = tpu.concatenate %3, %6 in 0 : vector<8x32xf32>, vector<2x32xf32> -> vector<10x32xf32>
    %8 = tpu.concatenate %7, %5 in 1 : vector<10x32xf32>, vector<10x32xf32> -> vector<10x64xf32>
    %cst_9 = arith.constant dense<0.000000e+00> : vector<10x64xf32>
    %9 = tpu.matmul %8, %0, %cst_9 {dimension_numbers = #tpu.dot_dimension_numbers<[1], [0], [0], [1], [0, 0, 1, 1], [], []>} : vector<10x64xf32>, vector<64x64xf32>, vector<10x64xf32> -> vector<10x64xf32>
    %10 = vector.extract_strided_slice %9 {offsets = [0, 0], sizes = [10, 32], strides = [1, 1]} : vector<10x64xf32> to vector<10x32xf32>
    %11 = vector.extract_strided_slice %9 {offsets = [0, 32], sizes = [10, 32], strides = [1, 1]} : vector<10x64xf32> to vector<10x32xf32>
    %cst_10 = arith.constant dense<0.000000e+00> : vector<10x10xf32>
    %12 = tpu.matmul %10, %5, %cst_10 {dimension_numbers = #tpu.dot_dimension_numbers<[1], [1], [0], [0], [0, 0, 1, 0], [], []>} : vector<10x32xf32>, vector<10x32xf32>, vector<10x10xf32> -> vector<10x10xf32>
    %cst_11 = arith.constant dense<0xFF800000> : vector<10xf32>
    %13 = vector.multi_reduction <maximumf>, %12, %cst_11 [1] : vector<10x10xf32> to vector<10xf32>
    %14 = vector.shape_cast %13 : vector<10xf32> to vector<10x1xf32>
    %15 = vector.broadcast %14 : vector<10x1xf32> to vector<10x10xf32>
    %16 = arith.subf %12, %15 : vector<10x10xf32>
    %17 = math.exp %16 : vector<10x10xf32>
    %cst_12 = arith.constant dense<0.000000e+00> : vector<10xf32>
    %18 = vector.multi_reduction <add>, %17, %cst_12 [1] : vector<10x10xf32> to vector<10xf32>
    %19 = vector.shape_cast %18 : vector<10xf32> to vector<10x1xf32>
    %20 = vector.broadcast %19 : vector<10x1xf32> to vector<10x10xf32>
    %21 = arith.divf %17, %20 : vector<10x10xf32>
    %cst_13 = arith.constant dense<0.000000e+00> : vector<10x32xf32>
    %22 = tpu.matmul %21, %5, %cst_13 {dimension_numbers = #tpu.dot_dimension_numbers<[1], [0], [0], [1], [0, 0, 1, 1], [], []>} : vector<10x10xf32>, vector<10x32xf32>, vector<10x32xf32> -> vector<10x32xf32>
    %cst_14 = arith.constant dense<0.000000e+00> : vector<10x8xf32>
    %23 = tpu.matmul %11, %3, %cst_14 {dimension_numbers = #tpu.dot_dimension_numbers<[1], [1], [0], [0], [0, 0, 1, 0], [], []>} : vector<10x32xf32>, vector<8x32xf32>, vector<10x8xf32> -> vector<10x8xf32>
    %cst_15 = arith.constant dense<0xFF800000> : vector<10xf32>
    %24 = vector.multi_reduction <maximumf>, %23, %cst_15 [1] : vector<10x8xf32> to vector<10xf32>
    %25 = vector.shape_cast %24 : vector<10xf32> to vector<10x1xf32>
    %26 = vector.broadcast %25 : vector<10x1xf32> to vector<10x8xf32>
    %27 = arith.subf %23, %26 : vector<10x8xf32>
    %28 = math.exp %27 : vector<10x8xf32>
    %cst_16 = arith.constant dense<0.000000e+00> : vector<10xf32>
    %29 = vector.multi_reduction <add>, %28, %cst_16 [1] : vector<10x8xf32> to vector<10xf32>
    %30 = vector.shape_cast %29 : vector<10xf32> to vector<10x1xf32>
    %31 = vector.broadcast %30 : vector<10x1xf32> to vector<10x8xf32>
    %32 = arith.divf %28, %31 : vector<10x8xf32>
    %cst_17 = arith.constant dense<0.000000e+00> : vector<10x32xf32>
    %33 = tpu.matmul %32, %3, %cst_17 {dimension_numbers = #tpu.dot_dimension_numbers<[1], [0], [0], [1], [0, 0, 1, 1], [], []>} : vector<10x8xf32>, vector<8x32xf32>, vector<10x32xf32> -> vector<10x32xf32>
    %34 = tpu.concatenate %22, %10, %33, %11 in 1 : vector<10x32xf32>, vector<10x32xf32>, vector<10x32xf32>, vector<10x32xf32> -> vector<10x128xf32>
    %cst_18 = arith.constant dense<0.000000e+00> : vector<10x64xf32>
    %35 = tpu.matmul %34, %1, %cst_18 {dimension_numbers = #tpu.dot_dimension_numbers<[1], [0], [0], [1], [0, 0, 1, 1], [], []>} : vector<10x128xf32>, vector<128x64xf32>, vector<10x64xf32> -> vector<10x64xf32>
    %36 = math.tanh %35 : vector<10x64xf32>
    %37 = vector.extract_strided_slice %36 {offsets = [0, 0], sizes = [8, 32], strides = [1, 1]} : vector<10x64xf32> to vector<8x32xf32>
    %38 = vector.extract_strided_slice %36 {offsets = [0, 32], sizes = [10, 32], strides = [1, 1]} : vector<10x64xf32> to vector<10x32xf32>
    %39 = tpu.concatenate %37, %38 in 0 : vector<8x32xf32>, vector<10x32xf32> -> vector<18x32xf32>
    %c0_19 = arith.constant 0 : index
    %c0_20 = arith.constant 0 : index
    %c0_21 = arith.constant 0 : index
    %40 = vector.load %arg4[%c0_19, %c0_20, %c0_21] : memref<2x18x32xf32, #tpu.memory_space<vmem>>, vector<1x18x32xf32>
    %41 = vector.shape_cast %40 : vector<1x18x32xf32> to vector<18x32xf32>
    %42 = vector.shape_cast %39 : vector<18x32xf32> to vector<1x18x32xf32>
    tpu.vector_store %arg4[%c0_19, %c0_20, %c0_21], %42 {strides = array<i32>} : memref<2x18x32xf32, #tpu.memory_space<vmem>>, vector<1x18x32xf32>,
    %c1 = arith.constant 1 : index
    %c0_22 = arith.constant 0 : index
    %c0_23 = arith.constant 0 : index
    %43 = vector.load %arg0[%c1, %c0_22, %c0_23] : memref<2x8x32xf32, #tpu.memory_space<vmem>>, vector<1x8x32xf32>
    %44 = vector.shape_cast %43 : vector<1x8x32xf32> to vector<8x32xf32>
    %c1_24 = arith.constant 1 : index
    %c0_25 = arith.constant 0 : index
    %c0_26 = arith.constant 0 : index
    %45 = vector.load %arg1[%c1_24, %c0_25, %c0_26] : memref<2x10x32xf32, #tpu.memory_space<vmem>>, vector<1x10x32xf32>
    %46 = vector.shape_cast %45 : vector<1x10x32xf32> to vector<10x32xf32>
    %cst_27 = arith.constant 0.000000e+00 : f32
    %47 = vector.broadcast %cst_27 : f32 to vector<2x32xf32>
    %48 = tpu.concatenate %44, %47 in 0 : vector<8x32xf32>, vector<2x32xf32> -> vector<10x32xf32>
    %49 = tpu.concatenate %48, %46 in 1 : vector<10x32xf32>, vector<10x32xf32> -> vector<10x64xf32>
    %cst_28 = arith.constant dense<0.000000e+00> : vector<10x64xf32>
    %50 = tpu.matmul %49, %0, %cst_28 {dimension_numbers = #tpu.dot_dimension_numbers<[1], [0], [0], [1], [0, 0, 1, 1], [], []>} : vector<10x64xf32>, vector<64x64xf32>, vector<10x64xf32> -> vector<10x64xf32>
    %51 = vector.extract_strided_slice %50 {offsets = [0, 0], sizes = [10, 32], strides = [1, 1]} : vector<10x64xf32> to vector<10x32xf32>
    %52 = vector.extract_strided_slice %50 {offsets = [0, 32], sizes = [10, 32], strides = [1, 1]} : vector<10x64xf32> to vector<10x32xf32>
    %cst_29 = arith.constant dense<0.000000e+00> : vector<10x10xf32>
    %53 = tpu.matmul %51, %46, %cst_29 {dimension_numbers = #tpu.dot_dimension_numbers<[1], [1], [0], [0], [0, 0, 1, 0], [], []>} : vector<10x32xf32>, vector<10x32xf32>, vector<10x10xf32> -> vector<10x10xf32>
    %cst_30 = arith.constant dense<0xFF800000> : vector<10xf32>
    %54 = vector.multi_reduction <maximumf>, %53, %cst_30 [1] : vector<10x10xf32> to vector<10xf32>
    %55 = vector.shape_cast %54 : vector<10xf32> to vector<10x1xf32>
    %56 = vector.broadcast %55 : vector<10x1xf32> to vector<10x10xf32>
    %57 = arith.subf %53, %56 : vector<10x10xf32>
    %58 = math.exp %57 : vector<10x10xf32>
    %cst_31 = arith.constant dense<0.000000e+00> : vector<10xf32>
    %59 = vector.multi_reduction <add>, %58, %cst_31 [1] : vector<10x10xf32> to vector<10xf32>
    %60 = vector.shape_cast %59 : vector<10xf32> to vector<10x1xf32>
    %61 = vector.broadcast %60 : vector<10x1xf32> to vector<10x10xf32>
    %62 = arith.divf %58, %61 : vector<10x10xf32>
    %cst_32 = arith.constant dense<0.000000e+00> : vector<10x32xf32>
    %63 = tpu.matmul %62, %46, %cst_32 {dimension_numbers = #tpu.dot_dimension_numbers<[1], [0], [0], [1], [0, 0, 1, 1], [], []>} : vector<10x10xf32>, vector<10x32xf32>, vector<10x32xf32> -> vector<10x32xf32>
    %cst_33 = arith.constant dense<0.000000e+00> : vector<10x8xf32>
    %64 = tpu.matmul %52, %44, %cst_33 {dimension_numbers = #tpu.dot_dimension_numbers<[1], [1], [0], [0], [0, 0, 1, 0], [], []>} : vector<10x32xf32>, vector<8x32xf32>, vector<10x8xf32> -> vector<10x8xf32>
    %cst_34 = arith.constant dense<0xFF800000> : vector<10xf32>
    %65 = vector.multi_reduction <maximumf>, %64, %cst_34 [1] : vector<10x8xf32> to vector<10xf32>
    %66 = vector.shape_cast %65 : vector<10xf32> to vector<10x1xf32>
    %67 = vector.broadcast %66 : vector<10x1xf32> to vector<10x8xf32>
    %68 = arith.subf %64, %67 : vector<10x8xf32>
    %69 = math.exp %68 : vector<10x8xf32>
    %cst_35 = arith.constant dense<0.000000e+00> : vector<10xf32>
    %70 = vector.multi_reduction <add>, %69, %cst_35 [1] : vector<10x8xf32> to vector<10xf32>
    %71 = vector.shape_cast %70 : vector<10xf32> to vector<10x1xf32>
    %72 = vector.broadcast %71 : vector<10x1xf32> to vector<10x8xf32>
    %73 = arith.divf %69, %72 : vector<10x8xf32>
    %cst_36 = arith.constant dense<0.000000e+00> : vector<10x32xf32>
    %74 = tpu.matmul %73, %44, %cst_36 {dimension_numbers = #tpu.dot_dimension_numbers<[1], [0], [0], [1], [0, 0, 1, 1], [], []>} : vector<10x8xf32>, vector<8x32xf32>, vector<10x32xf32> -> vector<10x32xf32>
    %75 = tpu.concatenate %63, %51, %74, %52 in 1 : vector<10x32xf32>, vector<10x32xf32>, vector<10x32xf32>, vector<10x32xf32> -> vector<10x128xf32>
    %cst_37 = arith.constant dense<0.000000e+00> : vector<10x64xf32>
    %76 = tpu.matmul %75, %1, %cst_37 {dimension_numbers = #tpu.dot_dimension_numbers<[1], [0], [0], [1], [0, 0, 1, 1], [], []>} : vector<10x128xf32>, vector<128x64xf32>, vector<10x64xf32> -> vector<10x64xf32>
    %77 = math.tanh %76 : vector<10x64xf32>
    %78 = vector.extract_strided_slice %77 {offsets = [0, 0], sizes = [8, 32], strides = [1, 1]} : vector<10x64xf32> to vector<8x32xf32>
    %79 = vector.extract_strided_slice %77 {offsets = [0, 32], sizes = [10, 32], strides = [1, 1]} : vector<10x64xf32> to vector<10x32xf32>
    %80 = tpu.concatenate %78, %79 in 0 : vector<8x32xf32>, vector<10x32xf32> -> vector<18x32xf32>
    %c1_38 = arith.constant 1 : index
    %c0_39 = arith.constant 0 : index
    %c0_40 = arith.constant 0 : index
    %81 = vector.load %arg4[%c1_38, %c0_39, %c0_40] : memref<2x18x32xf32, #tpu.memory_space<vmem>>, vector<1x18x32xf32>
    %82 = vector.shape_cast %81 : vector<1x18x32xf32> to vector<18x32xf32>
    %83 = vector.shape_cast %80 : vector<18x32xf32> to vector<1x18x32xf32>
    tpu.vector_store %arg4[%c1_38, %c0_39, %c0_40], %83 {strides = array<i32>} : memref<2x18x32xf32, #tpu.memory_space<vmem>>, vector<1x18x32xf32>,
    return
  }
}

</mosaic_0001>

<llo_original>
// kernel: multi_encoder_forward.1
$region0: #{multi_encoder_forward.1}
  #allocation0 [shape = 'u32[]', space=smem, size = 0x4, offset = 0x4, fixed_abs, tag = 'smem constant byte address 0x4 - core index']
  #allocation1 [shape = 'u32[144,128]{1,0:T(1,128)}', space=vmem, size = 0x12000, scoped, tag = 'internal scratch']
  %s0 = inlined_call_operand.vmem [shape: f32[2,8,32], index: 0, kind: input, shape index: {}]
  %s1 = inlined_call_operand.vmem [shape: f32[2,10,32], index: 1, kind: input, shape index: {}]
  %s2 = inlined_call_operand.vmem [shape: f32[64,64], index: 2, kind: input, shape index: {}]
  %s3 = inlined_call_operand.vmem [shape: f32[128,64], index: 3, kind: input, shape index: {}]
  %s4 = inlined_call_operand.vmem [shape: f32[2,18,32], index: 4, kind: output, shape index: {}]
  %s5 = sld [smem:[#allocation0]]
  $region26: #{multi_encoder_forward.1} parent=0
    _
  %s7 = ssub.s32 1, %s5
  %s8 = scalar_select 0, %s7, %s5
  // Predicated region
  $region2: #{multi_encoder_forward.1} parent=0 // pred_check
    _
  $region3: #{multi_encoder_forward.1} parent=0 // pred_check_branch
    %10 = sbr.rel (0) target = $region5
  $region4: #{multi_encoder_forward.1} parent=0 // pred_region
    _
  $region5: #{multi_encoder_forward.1} parent=0 // pred_fallthru
    _
  // Predicated region
  $region6: #{multi_encoder_forward.1} parent=0 // pred_check
    _
  $region7: #{multi_encoder_forward.1} parent=0 // pred_check_branch
    %12 = sbr.rel (0) target = $region9
  $region8: #{multi_encoder_forward.1} parent=0 // pred_region
    _
  $region9: #{multi_encoder_forward.1} parent=0 // pred_fallthru
    _
  // Predicated region
  $region10: #{multi_encoder_forward.1} parent=0 // pred_check
    _
  $region11: #{multi_encoder_forward.1} parent=0 // pred_check_branch
    %14 = sbr.rel (0) target = $region13
  $region12: #{multi_encoder_forward.1} parent=0 // pred_region
    _
  $region13: #{multi_encoder_forward.1} parent=0 // pred_fallthru
    _
  // Predicated region
  $region14: #{multi_encoder_forward.1} parent=0 // pred_check
    _
  $region15: #{multi_encoder_forward.1} parent=0 // pred_check_branch
    %16 = sbr.rel (0) target = $region17
  $region16: #{multi_encoder_forward.1} parent=0 // pred_region
    _
  $region17: #{multi_encoder_forward.1} parent=0 // pred_fallthru
    _
  %v17 = vld [vmem:[%s2] sm:$0xff]
  %v18 = vld [vmem:[%s2 + $0x8] sm:$0xff]
  %v19 = vld [vmem:[%s2 + $0x10] sm:$0xff]
  %v20 = vld [vmem:[%s2 + $0x18] sm:$0xff]
  %v21 = vld [vmem:[%s2 + $0x20] sm:$0xff]
  %v22 = vld [vmem:[%s2 + $0x28] sm:$0xff]
  %v23 = vld [vmem:[%s2 + $0x30] sm:$0xff]
  %v24 = vld [vmem:[%s2 + $0x38] sm:$0xff]
  %v25 = vld [vmem:[%s3] sm:$0xff]
  %v26 = vld [vmem:[%s3 + $0x8] sm:$0xff]
  %v27 = vld [vmem:[%s3 + $0x10] sm:$0xff]
  %v28 = vld [vmem:[%s3 + $0x18] sm:$0xff]
  %v29 = vld [vmem:[%s3 + $0x20] sm:$0xff]
  %v30 = vld [vmem:[%s3 + $0x28] sm:$0xff]
  %v31 = vld [vmem:[%s3 + $0x30] sm:$0xff]
  %v32 = vld [vmem:[%s3 + $0x38] sm:$0xff]
  %v33 = vld [vmem:[%s3 + $0x40] sm:$0xff]
  %v34 = vld [vmem:[%s3 + $0x48] sm:$0xff]
  %v35 = vld [vmem:[%s3 + $0x50] sm:$0xff]
  %v36 = vld [vmem:[%s3 + $0x58] sm:$0xff]
  %v37 = vld [vmem:[%s3 + $0x60] sm:$0xff]
  %v38 = vld [vmem:[%s3 + $0x68] sm:$0xff]
  %v39 = vld [vmem:[%s3 + $0x70] sm:$0xff]
  %v40 = vld [vmem:[%s3 + $0x78] sm:$0xff]
  %v41 = vld [vmem:[%s0] sm:$0xff]
  %v42 = vld [vmem:[%s1] sm:$0xff]
  %v43 = vld [vmem:[%s1 + $0x8] sm:$0x3]
  %46 = vrot.lane.b32.xlu0 %v42, 32
  %v47 = vpop.permute.xlu0 %46
  %48 = vrot.lane.b32.xlu0 %v43, 32
  %v49 = vpop.permute.xlu0 %48
  %vm52 = vcmask 261120
  %v53 = vsel %vm52, %v41, %v47
  %v54 = vsel %vm52, 0.0, %v49
  %vm55 = vcmask 523264
  %v57 = vsel %vm55, %v53, 0
  %v60 = vsel %vm55, %v54, 0
  %62 = vmatprep.subr.mxu0 0.0
  %63 = vmatpush1.msra.mxu0 %v17
  %64 = vmatprep.subr.mxu0 0.0
  %65 = vmatpush1.msra.mxu0 %v18
  %66 = vmatprep.subr.mxu0 0.0
  %67 = vmatpush1.msra.mxu0 %v19
  %68 = vmatprep.subr.mxu0 0.0
  %69 = vmatpush1.msra.mxu0 %v20
  %70 = vmatprep.subr.mxu0 0.0
  %71 = vmatpush1.msra.mxu0 %v21
  %72 = vmatprep.subr.mxu0 0.0
  %73 = vmatpush1.msra.mxu0 %v22
  %74 = vmatprep.subr.mxu0 0.0
  %75 = vmatpush1.msra.mxu0 %v23
  %76 = vmatprep.subr.mxu0 0.0
  %77 = vmatpush1.msra.mxu0 %v24
  %78 = vmatprep.subr.mxu0 0.0
  %79 = vmatpush1.msra.mxu0 0.0
  %80 = vmatprep.subr.mxu0 0.0
  %81 = vmatpush1.msra.mxu0 0.0
  %82 = vmatprep.subr.mxu0 0.0
  %83 = vmatpush1.msra.mxu0 0.0
  %84 = vmatprep.subr.mxu0 0.0
  %85 = vmatpush1.msra.mxu0 0.0
  %86 = vmatprep.subr.mxu0 0.0
  %87 = vmatpush1.msra.mxu0 0.0
  %88 = vmatprep.subr.mxu0 0.0
  %89 = vmatpush1.msra.mxu0 0.0
  %90 = vmatprep.subr.mxu0 0.0
  %91 = vmatpush1.msra.mxu0 0.0
  %92 = vmatprep.subr.mxu0 0.0
  %93 = vmatpush1.msra.mxu0 0.0
  %94 = vmatprep.subr.mxu0 0.0
  %95 = vmatpush1.msra.mxu0 0.0
  %96 = vmatprep.subr.mxu0 0.0
  %97 = vmatpush1.msra.mxu0 0.0
  %98 = vmatprep.subr.mxu0 0.0
  %99 = vmatpush1.msra.mxu0 0.0
  %100 = vmatprep.subr.mxu0 0.0
  %101 = vmatpush1.msra.mxu0 0.0
  %102 = vmatprep.subr.mxu0 0.0
  %103 = vmatpush1.msra.mxu0 0.0
  %104 = vmatprep.subr.mxu0 0.0
  %105 = vmatpush1.msra.mxu0 0.0
  %106 = vmatprep.subr.mxu0 0.0
  %107 = vmatpush1.msra.mxu0 0.0
  %108 = vmatprep.subr.mxu0 0.0
  %109 = vmatpush1.msra.mxu0 0.0
  %110 = vmatprep.subr.mxu0 0.0
  %111 = vmatpush1.msra.mxu0 0.0
  %112 = vmatprep.subr.mxu0 0.0
  %113 = vmatpush1.msra.mxu0 0.0
  %114 = vmatprep.subr.mxu0 0.0
  %115 = vmatpush1.msra.mxu0 0.0
  %116 = vmatprep.subr.mxu0 0.0
  %117 = vmatpush1.msra.mxu0 0.0
  %118 = vmatprep.subr.mxu0 0.0
  %119 = vmatpush1.msra.mxu0 0.0
  %120 = vmatprep.subr.mxu0 0.0
  %121 = vmatpush1.msra.mxu0 0.0
  %122 = vmatprep.subr.mxu0 0.0
  %123 = vmatpush1.msra.mxu0 0.0
  %124 = vmatprep.subr.mxu0 0.0
  %125 = vmatpush1.msra.mxu0 0.0
  %126 = vmatprep.mubr.f32.mxu0 0.0
  %127 = vmatmul.mubr.f32.gmra.mrb[0].mxu0 %v57
  %v128 = vpop.f32.mrb[0].mxu0
  %v129 = vadd.f32 0.0, %v128
  %v130 = vpop.f32.mrb[0].mxu0
  %131 = vmatprep.mubr.f32.mxu0 0.0
  %132 = vmatmul.mubr.f32.gmra.mrb[0].mxu0 %v60
  %v133 = vpop.f32.mrb[0].mxu0
  %v134 = vadd.f32 0.0, %v133
  %v135 = vpop.f32.mrb[0].mxu0
  %136 = vdwg.mxu0
  %v138 = vsel %vm52, %v129, 0
  %v141 = vsel %vm52, %v134, 0
  %v143 = vsel %vm52, %v42, 0
  %v145 = vsel %vm52, %v43, 0
  %147 = vmatprep.subr.mxu0 0.0
  %148 = vmatpush1.xpose.msra.mxu0 %v143
  %149 = vmatprep.subr.mxu0 0.0
  %150 = vmatpush1.xpose.msra.mxu0 %v145
  %151 = vmatprep.subr.mxu0 0.0
  %152 = vmatpush1.xpose.msra.mxu0 0.0
  %153 = vmatprep.subr.mxu0 0.0
  %154 = vmatpush1.xpose.msra.mxu0 0.0
  %155 = vmatprep.subr.mxu0 0.0
  %156 = vmatpush1.xpose.msra.mxu0 0.0
  %157 = vmatprep.subr.mxu0 0.0
  %158 = vmatpush1.xpose.msra.mxu0 0.0
  %159 = vmatprep.subr.mxu0 0.0
  %160 = vmatpush1.xpose.msra.mxu0 0.0
  %161 = vmatprep.subr.mxu0 0.0
  %162 = vmatpush1.xpose.msra.mxu0 0.0
  %163 = vmatprep.subr.mxu0 0.0
  %164 = vmatpush1.xpose.msra.mxu0 0.0
  %165 = vmatprep.subr.mxu0 0.0
  %166 = vmatpush1.xpose.msra.mxu0 0.0
  %167 = vmatprep.subr.mxu0 0.0
  %168 = vmatpush1.xpose.msra.mxu0 0.0
  %169 = vmatprep.subr.mxu0 0.0
  %170 = vmatpush1.xpose.msra.mxu0 0.0
  %171 = vmatprep.subr.mxu0 0.0
  %172 = vmatpush1.xpose.msra.mxu0 0.0
  %173 = vmatprep.subr.mxu0 0.0
  %174 = vmatpush1.xpose.msra.mxu0 0.0
  %175 = vmatprep.subr.mxu0 0.0
  %176 = vmatpush1.xpose.msra.mxu0 0.0
  %177 = vmatprep.subr.mxu0 0.0
  %178 = vmatpush1.xpose.msra.mxu0 0.0
  %179 = vmatprep.subr.mxu0 0.0
  %180 = vmatpush1.xpose.msra.mxu0 0.0
  %181 = vmatprep.subr.mxu0 0.0
  %182 = vmatpush1.xpose.msra.mxu0 0.0
  %183 = vmatprep.subr.mxu0 0.0
  %184 = vmatpush1.xpose.msra.mxu0 0.0
  %185 = vmatprep.subr.mxu0 0.0
  %186 = vmatpush1.xpose.msra.mxu0 0.0
  %187 = vmatprep.subr.mxu0 0.0
  %188 = vmatpush1.xpose.msra.mxu0 0.0
  %189 = vmatprep.subr.mxu0 0.0
  %190 = vmatpush1.xpose.msra.mxu0 0.0
  %191 = vmatprep.subr.mxu0 0.0
  %192 = vmatpush1.xpose.msra.mxu0 0.0
  %193 = vmatprep.subr.mxu0 0.0
  %194 = vmatpush1.xpose.msra.mxu0 0.0
  %195 = vmatprep.subr.mxu0 0.0
  %196 = vmatpush1.xpose.msra.mxu0 0.0
  %197 = vmatprep.subr.mxu0 0.0
  %198 = vmatpush1.xpose.msra.mxu0 0.0
  %199 = vmatprep.subr.mxu0 0.0
  %200 = vmatpush1.xpose.msra.mxu0 0.0
  %201 = vmatprep.subr.mxu0 0.0
  %202 = vmatpush1.xpose.msra.mxu0 0.0
  %203 = vmatprep.subr.mxu0 0.0
  %204 = vmatpush1.xpose.msra.mxu0 0.0
  %205 = vmatprep.subr.mxu0 0.0
  %206 = vmatpush1.xpose.msra.mxu0 0.0
  %207 = vmatprep.subr.mxu0 0.0
  %208 = vmatpush1.xpose.msra.mxu0 0.0
  %209 = vmatprep.subr.mxu0 0.0
  %210 = vmatpush1.xpose.msra.mxu0 0.0
  %211 = vmatprep.mubr.f32.mxu0 0.0
  %212 = vmatmul.mubr.f32.gmra.mrb[0].mxu0 %v138
  %v213 = vpop.f32.mrb[0].mxu0
  %v214 = vadd.f32 0.0, %v213
  %v215 = vpop.f32.mrb[0].mxu0
  %216 = vmatprep.mubr.f32.mxu0 0.0
  %217 = vmatmul.mubr.f32.gmra.mrb[0].mxu0 %v141
  %v218 = vpop.f32.mrb[0].mxu0
  %v219 = vadd.f32 0.0, %v218
  %v220 = vpop.f32.mrb[0].mxu0
  %221 = vdwg.mxu0
  %vm222 = vcmask 80896
  %v223 = vsel %vm222, %v214, -inf
  %224 = vmax.xlane.f32.xlu0 %v223
  %v225 = vpop.xlane.xlu0 %224
  %vm226 = vcmask 74752
  %v227 = vsel %vm226, %v219, -inf
  %228 = vmax.xlane.f32.xlu0 %v227
  %v229 = vpop.xlane.xlu0 %228
  %v230 = vsub.f32 %v214, %v225
  %v231 = vsub.f32 %v219, %v229
  %v232 = vmul.f32 %v230, 1.442695
  %v233 = vpow.pop %v232
  %v234 = vmul.f32 %v231, 1.442695
  %v235 = vpow.pop %v234
  %v236 = vsel %vm222, %v233, 0.0
  %237 = vadd.xlane.f32.xlu0 %v236
  %v238 = vpop.xlane.xlu0 %237
  %v239 = vsel %vm226, %v235, 0.0
  %240 = vadd.xlane.f32.xlu0 %v239
  %v241 = vpop.xlane.xlu0 %240
  %v242 = vrcp.pop %v238
  %v243 = vmul.f32 %v233, %v242
  %v244 = vrcp.pop %v241
  %v245 = vmul.f32 %v235, %v244
  %v247 = vsel %vm222, %v243, 0
  %v250 = vsel %vm222, %v245, 0
  %vm252 = vcmask 1041408
  %v253 = vsel %vm252, %v43, 0
  %255 = vmatprep.subr.mxu0 0.0
  %256 = vmatpush1.msra.mxu0 %v42
  %257 = vmatprep.subr.mxu0 0.0
  %258 = vmatpush1.msra.mxu0 %v253
  %259 = vmatprep.subr.mxu0 0.0
  %260 = vmatpush1.msra.mxu0 0.0
  %261 = vmatprep.subr.mxu0 0.0
  %262 = vmatpush1.msra.mxu0 0.0
  %263 = vmatprep.subr.mxu0 0.0
  %264 = vmatpush1.msra.mxu0 0.0
  %265 = vmatprep.subr.mxu0 0.0
  %266 = vmatpush1.msra.mxu0 0.0
  %267 = vmatprep.subr.mxu0 0.0
  %268 = vmatpush1.msra.mxu0 0.0
  %269 = vmatprep.subr.mxu0 0.0
  %270 = vmatpush1.msra.mxu0 0.0
  %271 = vmatprep.subr.mxu0 0.0
  %272 = vmatpush1.msra.mxu0 0.0
  %273 = vmatprep.subr.mxu0 0.0
  %274 = vmatpush1.msra.mxu0 0.0
  %275 = vmatprep.subr.mxu0 0.0
  %276 = vmatpush1.msra.mxu0 0.0
  %277 = vmatprep.subr.mxu0 0.0
  %278 = vmatpush1.msra.mxu0 0.0
  %279 = vmatprep.subr.mxu0 0.0
  %280 = vmatpush1.msra.mxu0 0.0
  %281 = vmatprep.subr.mxu0 0.0
  %282 = vmatpush1.msra.mxu0 0.0
  %283 = vmatprep.subr.mxu0 0.0
  %284 = vmatpush1.msra.mxu0 0.0
  %285 = vmatprep.subr.mxu0 0.0
  %286 = vmatpush1.msra.mxu0 0.0
  %287 = vmatprep.subr.mxu0 0.0
  %288 = vmatpush1.msra.mxu0 0.0
  %289 = vmatprep.subr.mxu0 0.0
  %290 = vmatpush1.msra.mxu0 0.0
  %291 = vmatprep.subr.mxu0 0.0
  %292 = vmatpush1.msra.mxu0 0.0
  %293 = vmatprep.subr.mxu0 0.0
  %294 = vmatpush1.msra.mxu0 0.0
  %295 = vmatprep.subr.mxu0 0.0
  %296 = vmatpush1.msra.mxu0 0.0
  %297 = vmatprep.subr.mxu0 0.0
  %298 = vmatpush1.msra.mxu0 0.0
  %299 = vmatprep.subr.mxu0 0.0
  %300 = vmatpush1.msra.mxu0 0.0
  %301 = vmatprep.subr.mxu0 0.0
  %302 = vmatpush1.msra.mxu0 0.0
  %303 = vmatprep.subr.mxu0 0.0
  %304 = vmatpush1.msra.mxu0 0.0
  %305 = vmatprep.subr.mxu0 0.0
  %306 = vmatpush1.msra.mxu0 0.0
  %307 = vmatprep.subr.mxu0 0.0
  %308 = vmatpush1.msra.mxu0 0.0
  %309 = vmatprep.subr.mxu0 0.0
  %310 = vmatpush1.msra.mxu0 0.0
  %311 = vmatprep.subr.mxu0 0.0
  %312 = vmatpush1.msra.mxu0 0.0
  %313 = vmatprep.subr.mxu0 0.0
  %314 = vmatpush1.msra.mxu0 0.0
  %315 = vmatprep.subr.mxu0 0.0
  %316 = vmatpush1.msra.mxu0 0.0
  %317 = vmatprep.subr.mxu0 0.0
  %318 = vmatpush1.msra.mxu0 0.0
  %319 = vmatprep.mubr.f32.mxu0 0.0
  %320 = vmatmul.mubr.f32.gmra.mrb[0].mxu0 %v247
  %v321 = vpop.f32.mrb[0].mxu0
  %v322 = vadd.f32 0.0, %v321
  %v323 = vpop.f32.mrb[0].mxu0
  %324 = vmatprep.mubr.f32.mxu0 0.0
  %325 = vmatmul.mubr.f32.gmra.mrb[0].mxu0 %v250
  %v326 = vpop.f32.mrb[0].mxu0
  %v327 = vadd.f32 0.0, %v326
  %v328 = vpop.f32.mrb[0].mxu0
  %329 = vdwg.mxu0
  %330 = vrot.lane.b32.xlu0 %v129, 96
  %v331 = vpop.permute.xlu0 %330
  %332 = vrot.lane.b32.xlu0 %v134, 96
  %v333 = vpop.permute.xlu0 %332
  %v334 = vsel %vm52, %v331, 0
  %v336 = vsel %vm52, %v333, 0
  %v339 = vsel %vm52, %v41, 0
  %341 = vmatprep.subr.mxu0 0.0
  %342 = vmatpush1.xpose.msra.mxu0 %v339
  %343 = vmatprep.subr.mxu0 0.0
  %344 = vmatpush1.xpose.msra.mxu0 0.0
  %345 = vmatprep.subr.mxu0 0.0
  %346 = vmatpush1.xpose.msra.mxu0 0.0
  %347 = vmatprep.subr.mxu0 0.0
  %348 = vmatpush1.xpose.msra.mxu0 0.0
  %349 = vmatprep.subr.mxu0 0.0
  %350 = vmatpush1.xpose.msra.mxu0 0.0
  %351 = vmatprep.subr.mxu0 0.0
  %352 = vmatpush1.xpose.msra.mxu0 0.0
  %353 = vmatprep.subr.mxu0 0.0
  %354 = vmatpush1.xpose.msra.mxu0 0.0
  %355 = vmatprep.subr.mxu0 0.0
  %356 = vmatpush1.xpose.msra.mxu0 0.0
  %357 = vmatprep.subr.mxu0 0.0
  %358 = vmatpush1.xpose.msra.mxu0 0.0
  %359 = vmatprep.subr.mxu0 0.0
  %360 = vmatpush1.xpose.msra.mxu0 0.0
  %361 = vmatprep.subr.mxu0 0.0
  %362 = vmatpush1.xpose.msra.mxu0 0.0
  %363 = vmatprep.subr.mxu0 0.0
  %364 = vmatpush1.xpose.msra.mxu0 0.0
  %365 = vmatprep.subr.mxu0 0.0
  %366 = vmatpush1.xpose.msra.mxu0 0.0
  %367 = vmatprep.subr.mxu0 0.0
  %368 = vmatpush1.xpose.msra.mxu0 0.0
  %369 = vmatprep.subr.mxu0 0.0
  %370 = vmatpush1.xpose.msra.mxu0 0.0
  %371 = vmatprep.subr.mxu0 0.0
  %372 = vmatpush1.xpose.msra.mxu0 0.0
  %373 = vmatprep.subr.mxu0 0.0
  %374 = vmatpush1.xpose.msra.mxu0 0.0
  %375 = vmatprep.subr.mxu0 0.0
  %376 = vmatpush1.xpose.msra.mxu0 0.0
  %377 = vmatprep.subr.mxu0 0.0
  %378 = vmatpush1.xpose.msra.mxu0 0.0
  %379 = vmatprep.subr.mxu0 0.0
  %380 = vmatpush1.xpose.msra.mxu0 0.0
  %381 = vmatprep.subr.mxu0 0.0
  %382 = vmatpush1.xpose.msra.mxu0 0.0
  %383 = vmatprep.subr.mxu0 0.0
  %384 = vmatpush1.xpose.msra.mxu0 0.0
  %385 = vmatprep.subr.mxu0 0.0
  %386 = vmatpush1.xpose.msra.mxu0 0.0
  %387 = vmatprep.subr.mxu0 0.0
  %388 = vmatpush1.xpose.msra.mxu0 0.0
  %389 = vmatprep.subr.mxu0 0.0
  %390 = vmatpush1.xpose.msra.mxu0 0.0
  %391 = vmatprep.subr.mxu0 0.0
  %392 = vmatpush1.xpose.msra.mxu0 0.0
  %393 = vmatprep.subr.mxu0 0.0
  %394 = vmatpush1.xpose.msra.mxu0 0.0
  %395 = vmatprep.subr.mxu0 0.0
  %396 = vmatpush1.xpose.msra.mxu0 0.0
  %397 = vmatprep.subr.mxu0 0.0
  %398 = vmatpush1.xpose.msra.mxu0 0.0
  %399 = vmatprep.subr.mxu0 0.0
  %400 = vmatpush1.xpose.msra.mxu0 0.0
  %401 = vmatprep.subr.mxu0 0.0
  %402 = vmatpush1.xpose.msra.mxu0 0.0
  %403 = vmatprep.subr.mxu0 0.0
  %404 = vmatpush1.xpose.msra.mxu0 0.0
  %405 = vmatprep.mubr.f32.mxu0 0.0
  %406 = vmatmul.mubr.f32.gmra.mrb[0].mxu0 %v334
  %v407 = vpop.f32.mrb[0].mxu0
  %v408 = vadd.f32 0.0, %v407
  %v409 = vpop.f32.mrb[0].mxu0
  %410 = vmatprep.mubr.f32.mxu0 0.0
  %411 = vmatmul.mubr.f32.gmra.mrb[0].mxu0 %v336
  %v412 = vpop.f32.mrb[0].mxu0
  %v413 = vadd.f32 0.0, %v412
  %v414 = vpop.f32.mrb[0].mxu0
  %415 = vdwg.mxu0
  %vm416 = vcmask 64512
  %v417 = vsel %vm416, %v408, -inf
  %418 = vmax.xlane.f32.xlu0 %v417
  %v419 = vpop.xlane.xlu0 %418
  %vm420 = vcmask 58368
  %v421 = vsel %vm420, %v413, -inf
  %422 = vmax.xlane.f32.xlu0 %v421
  %v423 = vpop.xlane.xlu0 %422
  %v424 = vsub.f32 %v408, %v419
  %v425 = vsub.f32 %v413, %v423
  %v426 = vmul.f32 %v424, 1.442695
  %v427 = vpow.pop %v426
  %v428 = vmul.f32 %v425, 1.442695
  %v429 = vpow.pop %v428
  %v430 = vsel %vm416, %v427, 0.0
  %431 = vadd.xlane.f32.xlu0 %v430
  %v432 = vpop.xlane.xlu0 %431
  %v433 = vsel %vm420, %v429, 0.0
  %434 = vadd.xlane.f32.xlu0 %v433
  %v435 = vpop.xlane.xlu0 %434
  %v436 = vrcp.pop %v432
  %v437 = vmul.f32 %v427, %v436
  %v438 = vrcp.pop %v435
  %v439 = vmul.f32 %v429, %v438
  %v441 = vsel %vm416, %v437, 0
  %v444 = vsel %vm416, %v439, 0
  %446 = vmatprep.subr.mxu0 0.0
  %447 = vmatpush1.msra.mxu0 %v41
  %448 = vmatprep.subr.mxu0 0.0
  %449 = vmatpush1.msra.mxu0 0.0
  %450 = vmatprep.subr.mxu0 0.0
  %451 = vmatpush1.msra.mxu0 0.0
  %452 = vmatprep.subr.mxu0 0.0
  %453 = vmatpush1.msra.mxu0 0.0
  %454 = vmatprep.subr.mxu0 0.0
  %455 = vmatpush1.msra.mxu0 0.0
  %456 = vmatprep.subr.mxu0 0.0
  %457 = vmatpush1.msra.mxu0 0.0
  %458 = vmatprep.subr.mxu0 0.0
  %459 = vmatpush1.msra.mxu0 0.0
  %460 = vmatprep.subr.mxu0 0.0
  %461 = vmatpush1.msra.mxu0 0.0
  %462 = vmatprep.subr.mxu0 0.0
  %463 = vmatpush1.msra.mxu0 0.0
  %464 = vmatprep.subr.mxu0 0.0
  %465 = vmatpush1.msra.mxu0 0.0
  %466 = vmatprep.subr.mxu0 0.0
  %467 = vmatpush1.msra.mxu0 0.0
  %468 = vmatprep.subr.mxu0 0.0
  %469 = vmatpush1.msra.mxu0 0.0
  %470 = vmatprep.subr.mxu0 0.0
  %471 = vmatpush1.msra.mxu0 0.0
  %472 = vmatprep.subr.mxu0 0.0
  %473 = vmatpush1.msra.mxu0 0.0
  %474 = vmatprep.subr.mxu0 0.0
  %475 = vmatpush1.msra.mxu0 0.0
  %476 = vmatprep.subr.mxu0 0.0
  %477 = vmatpush1.msra.mxu0 0.0
  %478 = vmatprep.subr.mxu0 0.0
  %479 = vmatpush1.msra.mxu0 0.0
  %480 = vmatprep.subr.mxu0 0.0
  %481 = vmatpush1.msra.mxu0 0.0
  %482 = vmatprep.subr.mxu0 0.0
  %483 = vmatpush1.msra.mxu0 0.0
  %484 = vmatprep.subr.mxu0 0.0
  %485 = vmatpush1.msra.mxu0 0.0
  %486 = vmatprep.subr.mxu0 0.0
  %487 = vmatpush1.msra.mxu0 0.0
  %488 = vmatprep.subr.mxu0 0.0
  %489 = vmatpush1.msra.mxu0 0.0
  %490 = vmatprep.subr.mxu0 0.0
  %491 = vmatpush1.msra.mxu0 0.0
  %492 = vmatprep.subr.mxu0 0.0
  %493 = vmatpush1.msra.mxu0 0.0
  %494 = vmatprep.subr.mxu0 0.0
  %495 = vmatpush1.msra.mxu0 0.0
  %496 = vmatprep.subr.mxu0 0.0
  %497 = vmatpush1.msra.mxu0 0.0
  %498 = vmatprep.subr.mxu0 0.0
  %499 = vmatpush1.msra.mxu0 0.0
  %500 = vmatprep.subr.mxu0 0.0
  %501 = vmatpush1.msra.mxu0 0.0
  %502 = vmatprep.subr.mxu0 0.0
  %503 = vmatpush1.msra.mxu0 0.0
  %504 = vmatprep.subr.mxu0 0.0
  %505 = vmatpush1.msra.mxu0 0.0
  %506 = vmatprep.subr.mxu0 0.0
  %507 = vmatpush1.msra.mxu0 0.0
  %508 = vmatprep.subr.mxu0 0.0
  %509 = vmatpush1.msra.mxu0 0.0
  %510 = vmatprep.mubr.f32.mxu0 0.0
  %511 = vmatmul.mubr.f32.gmra.mrb[0].mxu0 %v441
  %v512 = vpop.f32.mrb[0].mxu0
  %v513 = vadd.f32 0.0, %v512
  %v514 = vpop.f32.mrb[0].mxu0
  %515 = vmatprep.mubr.f32.mxu0 0.0
  %516 = vmatmul.mubr.f32.gmra.mrb[0].mxu0 %v444
  %v517 = vpop.f32.mrb[0].mxu0
  %v518 = vadd.f32 0.0, %v517
  %v519 = vpop.f32.mrb[0].mxu0
  %520 = vdwg.mxu0
  %521 = vrot.lane.b32.xlu0 %v129, 32
  %v522 = vpop.permute.xlu0 %521
  %523 = vrot.lane.b32.xlu0 %v134, 32
  %v524 = vpop.permute.xlu0 %523
  %529 = vrot.lane.b32.xlu0 %v513, 64
  %v530 = vpop.permute.xlu0 %529
  %531 = vrot.lane.b32.xlu0 %v518, 64
  %v532 = vpop.permute.xlu0 %531
  %535 = vrot.lane.b32.xlu0 %v129, 64
  %v536 = vpop.permute.xlu0 %535
  %537 = vrot.lane.b32.xlu0 %v134, 64
  %v538 = vpop.permute.xlu0 %537
  %v541 = vsel %vm52, %v322, %v522
  %v542 = vsel %vm52, %v327, %v524
  %v543 = vsel %vm55, %v541, %v530
  %v544 = vsel %vm55, %v542, %v532
  %vm545 = vcmask 785408
  %v546 = vsel %vm545, %v543, %v536
  %v547 = vsel %vm545, %v544, %v538
  %548 = vmatprep.subr.mxu0 0.0
  %549 = vmatpush1.msra.mxu0 %v25
  %550 = vmatprep.subr.mxu0 0.0
  %551 = vmatpush1.msra.mxu0 %v26
  %552 = vmatprep.subr.mxu0 0.0
  %553 = vmatpush1.msra.mxu0 %v27
  %554 = vmatprep.subr.mxu0 0.0
  %555 = vmatpush1.msra.mxu0 %v28
  %556 = vmatprep.subr.mxu0 0.0
  %557 = vmatpush1.msra.mxu0 %v29
  %558 = vmatprep.subr.mxu0 0.0
  %559 = vmatpush1.msra.mxu0 %v30
  %560 = vmatprep.subr.mxu0 0.0
  %561 = vmatpush1.msra.mxu0 %v31
  %562 = vmatprep.subr.mxu0 0.0
  %563 = vmatpush1.msra.mxu0 %v32
  %564 = vmatprep.subr.mxu0 0.0
  %565 = vmatpush1.msra.mxu0 %v33
  %566 = vmatprep.subr.mxu0 0.0
  %567 = vmatpush1.msra.mxu0 %v34
  %568 = vmatprep.subr.mxu0 0.0
  %569 = vmatpush1.msra.mxu0 %v35
  %570 = vmatprep.subr.mxu0 0.0
  %571 = vmatpush1.msra.mxu0 %v36
  %572 = vmatprep.subr.mxu0 0.0
  %573 = vmatpush1.msra.mxu0 %v37
  %574 = vmatprep.subr.mxu0 0.0
  %575 = vmatpush1.msra.mxu0 %v38
  %576 = vmatprep.subr.mxu0 0.0
  %577 = vmatpush1.msra.mxu0 %v39
  %578 = vmatprep.subr.mxu0 0.0
  %579 = vmatpush1.msra.mxu0 %v40
  %580 = vmatprep.subr.mxu0 0.0
  %581 = vmatpush1.msra.mxu0 0.0
  %582 = vmatprep.subr.mxu0 0.0
  %583 = vmatpush1.msra.mxu0 0.0
  %584 = vmatprep.subr.mxu0 0.0
  %585 = vmatpush1.msra.mxu0 0.0
  %586 = vmatprep.subr.mxu0 0.0
  %587 = vmatpush1.msra.mxu0 0.0
  %588 = vmatprep.subr.mxu0 0.0
  %589 = vmatpush1.msra.mxu0 0.0
  %590 = vmatprep.subr.mxu0 0.0
  %591 = vmatpush1.msra.mxu0 0.0
  %592 = vmatprep.subr.mxu0 0.0
  %593 = vmatpush1.msra.mxu0 0.0
  %594 = vmatprep.subr.mxu0 0.0
  %595 = vmatpush1.msra.mxu0 0.0
  %596 = vmatprep.subr.mxu0 0.0
  %597 = vmatpush1.msra.mxu0 0.0
  %598 = vmatprep.subr.mxu0 0.0
  %599 = vmatpush1.msra.mxu0 0.0
  %600 = vmatprep.subr.mxu0 0.0
  %601 = vmatpush1.msra.mxu0 0.0
  %602 = vmatprep.subr.mxu0 0.0
  %603 = vmatpush1.msra.mxu0 0.0
  %604 = vmatprep.subr.mxu0 0.0
  %605 = vmatpush1.msra.mxu0 0.0
  %606 = vmatprep.subr.mxu0 0.0
  %607 = vmatpush1.msra.mxu0 0.0
  %608 = vmatprep.subr.mxu0 0.0
  %609 = vmatpush1.msra.mxu0 0.0
  %610 = vmatprep.subr.mxu0 0.0
  %611 = vmatpush1.msra.mxu0 0.0
  %612 = vmatprep.mubr.f32.mxu0 0.0
  %613 = vmatmul.mubr.f32.gmra.mrb[0].mxu0 %v546
  %v614 = vpop.f32.mrb[0].mxu0
  %v615 = vadd.f32 0.0, %v614
  %v616 = vpop.f32.mrb[0].mxu0
  %617 = vmatprep.mubr.f32.mxu0 0.0
  %618 = vmatmul.mubr.f32.gmra.mrb[0].mxu0 %v547
  %v619 = vpop.f32.mrb[0].mxu0
  %v620 = vadd.f32 0.0, %v619
  %v621 = vpop.f32.mrb[0].mxu0
  %622 = vdwg.mxu0
  %v623 = vtanh.pop %v615
  %v624 = vtanh.pop %v620
  %627 = vrot.lane.b32.xlu0 %v623, 96
  %v628 = vpop.permute.xlu0 %627
  %629 = vrot.lane.b32.xlu0 %v624, 96
  %v630 = vpop.permute.xlu0 %629
  %633 = vst.msk [vmem:[%s4] sm:$0xff] %vm52, %v623
  %634 = vst.msk [vmem:[%s4 + $0x8] sm:$0xff] %vm52, %v628
  %vm635 = vcmask 254976
  %636 = vst.msk [vmem:[%s4 + $0x10] sm:$0x3] %vm635, %v630
  %s637 = scalar_lea.vmem %s0, 8
  %v638 = vld [vmem:[%s637] sm:$0xff]
  %s639 = scalar_lea.vmem %s1, 16
  %v640 = vld [vmem:[%s639] sm:$0xff]
  %v641 = vld [vmem:[%s639 + $0x8] sm:$0x3]
  %644 = vrot.lane.b32.xlu0 %v640, 32
  %v645 = vpop.permute.xlu0 %644
  %646 = vrot.lane.b32.xlu0 %v641, 32
  %v647 = vpop.permute.xlu0 %646
  %v650 = vsel %vm52, %v638, %v645
  %v651 = vsel %vm52, 0.0, %v647
  %v653 = vsel %vm55, %v650, 0
  %v656 = vsel %vm55, %v651, 0
  %658 = vmatprep.subr.mxu0 0.0
  %659 = vmatpush1.msra.mxu0 %v17
  %660 = vmatprep.subr.mxu0 0.0
  %661 = vmatpush1.msra.mxu0 %v18
  %662 = vmatprep.subr.mxu0 0.0
  %663 = vmatpush1.msra.mxu0 %v19
  %664 = vmatprep.subr.mxu0 0.0
  %665 = vmatpush1.msra.mxu0 %v20
  %666 = vmatprep.subr.mxu0 0.0
  %667 = vmatpush1.msra.mxu0 %v21
  %668 = vmatprep.subr.mxu0 0.0
  %669 = vmatpush1.msra.mxu0 %v22
  %670 = vmatprep.subr.mxu0 0.0
  %671 = vmatpush1.msra.mxu0 %v23
  %672 = vmatprep.subr.mxu0 0.0
  %673 = vmatpush1.msra.mxu0 %v24
  %674 = vmatprep.subr.mxu0 0.0
  %675 = vmatpush1.msra.mxu0 0.0
  %676 = vmatprep.subr.mxu0 0.0
  %677 = vmatpush1.msra.mxu0 0.0
  %678 = vmatprep.subr.mxu0 0.0
  %679 = vmatpush1.msra.mxu0 0.0
  %680 = vmatprep.subr.mxu0 0.0
  %681 = vmatpush1.msra.mxu0 0.0
  %682 = vmatprep.subr.mxu0 0.0
  %683 = vmatpush1.msra.mxu0 0.0
  %684 = vmatprep.subr.mxu0 0.0
  %685 = vmatpush1.msra.mxu0 0.0
  %686 = vmatprep.subr.mxu0 0.0
  %687 = vmatpush1.msra.mxu0 0.0
  %688 = vmatprep.subr.mxu0 0.0
  %689 = vmatpush1.msra.mxu0 0.0
  %690 = vmatprep.subr.mxu0 0.0
  %691 = vmatpush1.msra.mxu0 0.0
  %692 = vmatprep.subr.mxu0 0.0
  %693 = vmatpush1.msra.mxu0 0.0
  %694 = vmatprep.subr.mxu0 0.0
  %695 = vmatpush1.msra.mxu0 0.0
  %696 = vmatprep.subr.mxu0 0.0
  %697 = vmatpush1.msra.mxu0 0.0
  %698 = vmatprep.subr.mxu0 0.0
  %699 = vmatpush1.msra.mxu0 0.0
  %700 = vmatprep.subr.mxu0 0.0
  %701 = vmatpush1.msra.mxu0 0.0
  %702 = vmatprep.subr.mxu0 0.0
  %703 = vmatpush1.msra.mxu0 0.0
  %704 = vmatprep.subr.mxu0 0.0
  %705 = vmatpush1.msra.mxu0 0.0
  %706 = vmatprep.subr.mxu0 0.0
  %707 = vmatpush1.msra.mxu0 0.0
  %708 = vmatprep.subr.mxu0 0.0
  %709 = vmatpush1.msra.mxu0 0.0
  %710 = vmatprep.subr.mxu0 0.0
  %711 = vmatpush1.msra.mxu0 0.0
  %712 = vmatprep.subr.mxu0 0.0
  %713 = vmatpush1.msra.mxu0 0.0
  %714 = vmatprep.subr.mxu0 0.0
  %715 = vmatpush1.msra.mxu0 0.0
  %716 = vmatprep.subr.mxu0 0.0
  %717 = vmatpush1.msra.mxu0 0.0
  %718 = vmatprep.subr.mxu0 0.0
  %719 = vmatpush1.msra.mxu0 0.0
  %720 = vmatprep.subr.mxu0 0.0
  %721 = vmatpush1.msra.mxu0 0.0
  %722 = vmatprep.mubr.f32.mxu0 0.0
  %723 = vmatmul.mubr.f32.gmra.mrb[0].mxu0 %v653
  %v724 = vpop.f32.mrb[0].mxu0
  %v725 = vadd.f32 0.0, %v724
  %v726 = vpop.f32.mrb[0].mxu0
  %727 = vmatprep.mubr.f32.mxu0 0.0
  %728 = vmatmul.mubr.f32.gmra.mrb[0].mxu0 %v656
  %v729 = vpop.f32.mrb[0].mxu0
  %v730 = vadd.f32 0.0, %v729
  %v731 = vpop.f32.mrb[0].mxu0
  %732 = vdwg.mxu0
  %v734 = vsel %vm52, %v725, 0
  %v737 = vsel %vm52, %v730, 0
  %v739 = vsel %vm52, %v640, 0
  %v741 = vsel %vm52, %v641, 0
  %743 = vmatprep.subr.mxu0 0.0
  %744 = vmatpush1.xpose.msra.mxu0 %v739
  %745 = vmatprep.subr.mxu0 0.0
  %746 = vmatpush1.xpose.msra.mxu0 %v741
  %747 = vmatprep.subr.mxu0 0.0
  %748 = vmatpush1.xpose.msra.mxu0 0.0
  %749 = vmatprep.subr.mxu0 0.0
  %750 = vmatpush1.xpose.msra.mxu0 0.0
  %751 = vmatprep.subr.mxu0 0.0
  %752 = vmatpush1.xpose.msra.mxu0 0.0
  %753 = vmatprep.subr.mxu0 0.0
  %754 = vmatpush1.xpose.msra.mxu0 0.0
  %755 = vmatprep.subr.mxu0 0.0
  %756 = vmatpush1.xpose.msra.mxu0 0.0
  %757 = vmatprep.subr.mxu0 0.0
  %758 = vmatpush1.xpose.msra.mxu0 0.0
  %759 = vmatprep.subr.mxu0 0.0
  %760 = vmatpush1.xpose.msra.mxu0 0.0
  %761 = vmatprep.subr.mxu0 0.0
  %762 = vmatpush1.xpose.msra.mxu0 0.0
  %763 = vmatprep.subr.mxu0 0.0
  %764 = vmatpush1.xpose.msra.mxu0 0.0
  %765 = vmatprep.subr.mxu0 0.0
  %766 = vmatpush1.xpose.msra.mxu0 0.0
  %767 = vmatprep.subr.mxu0 0.0
  %768 = vmatpush1.xpose.msra.mxu0 0.0
  %769 = vmatprep.subr.mxu0 0.0
  %770 = vmatpush1.xpose.msra.mxu0 0.0
  %771 = vmatprep.subr.mxu0 0.0
  %772 = vmatpush1.xpose.msra.mxu0 0.0
  %773 = vmatprep.subr.mxu0 0.0
  %774 = vmatpush1.xpose.msra.mxu0 0.0
  %775 = vmatprep.subr.mxu0 0.0
  %776 = vmatpush1.xpose.msra.mxu0 0.0
  %777 = vmatprep.subr.mxu0 0.0
  %778 = vmatpush1.xpose.msra.mxu0 0.0
  %779 = vmatprep.subr.mxu0 0.0
  %780 = vmatpush1.xpose.msra.mxu0 0.0
  %781 = vmatprep.subr.mxu0 0.0
  %782 = vmatpush1.xpose.msra.mxu0 0.0
  %783 = vmatprep.subr.mxu0 0.0
  %784 = vmatpush1.xpose.msra.mxu0 0.0
  %785 = vmatprep.subr.mxu0 0.0
  %786 = vmatpush1.xpose.msra.mxu0 0.0
  %787 = vmatprep.subr.mxu0 0.0
  %788 = vmatpush1.xpose.msra.mxu0 0.0
  %789 = vmatprep.subr.mxu0 0.0
  %790 = vmatpush1.xpose.msra.mxu0 0.0
  %791 = vmatprep.subr.mxu0 0.0
  %792 = vmatpush1.xpose.msra.mxu0 0.0
  %793 = vmatprep.subr.mxu0 0.0
  %794 = vmatpush1.xpose.msra.mxu0 0.0
  %795 = vmatprep.subr.mxu0 0.0
  %796 = vmatpush1.xpose.msra.mxu0 0.0
  %797 = vmatprep.subr.mxu0 0.0
  %798 = vmatpush1.xpose.msra.mxu0 0.0
  %799 = vmatprep.subr.mxu0 0.0
  %800 = vmatpush1.xpose.msra.mxu0 0.0
  %801 = vmatprep.subr.mxu0 0.0
  %802 = vmatpush1.xpose.msra.mxu0 0.0
  %803 = vmatprep.subr.mxu0 0.0
  %804 = vmatpush1.xpose.msra.mxu0 0.0
  %805 = vmatprep.subr.mxu0 0.0
  %806 = vmatpush1.xpose.msra.mxu0 0.0
  %807 = vmatprep.mubr.f32.mxu0 0.0
  %808 = vmatmul.mubr.f32.gmra.mrb[0].mxu0 %v734
  %v809 = vpop.f32.mrb[0].mxu0
  %v810 = vadd.f32 0.0, %v809
  %v811 = vpop.f32.mrb[0].mxu0
  %812 = vmatprep.mubr.f32.mxu0 0.0
  %813 = vmatmul.mubr.f32.gmra.mrb[0].mxu0 %v737
  %v814 = vpop.f32.mrb[0].mxu0
  %v815 = vadd.f32 0.0, %v814
  %v816 = vpop.f32.mrb[0].mxu0
  %817 = vdwg.mxu0
  %v818 = vsel %vm222, %v810, -inf
  %819 = vmax.xlane.f32.xlu0 %v818
  %v820 = vpop.xlane.xlu0 %819
  %v821 = vsel %vm226, %v815, -inf
  %822 = vmax.xlane.f32.xlu0 %v821
  %v823 = vpop.xlane.xlu0 %822
  %v824 = vsub.f32 %v810, %v820
  %v825 = vsub.f32 %v815, %v823
  %v826 = vmul.f32 %v824, 1.442695
  %v827 = vpow.pop %v826
  %v828 = vmul.f32 %v825, 1.442695
  %v829 = vpow.pop %v828
  %v830 = vsel %vm222, %v827, 0.0
  %831 = vadd.xlane.f32.xlu0 %v830
  %v832 = vpop.xlane.xlu0 %831
  %v833 = vsel %vm226, %v829, 0.0
  %834 = vadd.xlane.f32.xlu0 %v833
  %v835 = vpop.xlane.xlu0 %834
  %v836 = vrcp.pop %v832
  %v837 = vmul.f32 %v827, %v836
  %v838 = vrcp.pop %v835
  %v839 = vmul.f32 %v829, %v838
  %v841 = vsel %vm222, %v837, 0
  %v844 = vsel %vm222, %v839, 0
  %v846 = vsel %vm252, %v641, 0
  %848 = vmatprep.subr.mxu0 0.0
  %849 = vmatpush1.msra.mxu0 %v640
  %850 = vmatprep.subr.mxu0 0.0
  %851 = vmatpush1.msra.mxu0 %v846
  %852 = vmatprep.subr.mxu0 0.0
  %853 = vmatpush1.msra.mxu0 0.0
  %854 = vmatprep.subr.mxu0 0.0
  %855 = vmatpush1.msra.mxu0 0.0
  %856 = vmatprep.subr.mxu0 0.0
  %857 = vmatpush1.msra.mxu0 0.0
  %858 = vmatprep.subr.mxu0 0.0
  %859 = vmatpush1.msra.mxu0 0.0
  %860 = vmatprep.subr.mxu0 0.0
  %861 = vmatpush1.msra.mxu0 0.0
  %862 = vmatprep.subr.mxu0 0.0
  %863 = vmatpush1.msra.mxu0 0.0
  %864 = vmatprep.subr.mxu0 0.0
  %865 = vmatpush1.msra.mxu0 0.0
  %866 = vmatprep.subr.mxu0 0.0
  %867 = vmatpush1.msra.mxu0 0.0
  %868 = vmatprep.subr.mxu0 0.0
  %869 = vmatpush1.msra.mxu0 0.0
  %870 = vmatprep.subr.mxu0 0.0
  %871 = vmatpush1.msra.mxu0 0.0
  %872 = vmatprep.subr.mxu0 0.0
  %873 = vmatpush1.msra.mxu0 0.0
  %874 = vmatprep.subr.mxu0 0.0
  %875 = vmatpush1.msra.mxu0 0.0
  %876 = vmatprep.subr.mxu0 0.0
  %877 = vmatpush1.msra.mxu0 0.0
  %878 = vmatprep.subr.mxu0 0.0
  %879 = vmatpush1.msra.mxu0 0.0
  %880 = vmatprep.subr.mxu0 0.0
  %881 = vmatpush1.msra.mxu0 0.0
  %882 = vmatprep.subr.mxu0 0.0
  %883 = vmatpush1.msra.mxu0 0.0
  %884 = vmatprep.subr.mxu0 0.0
  %885 = vmatpush1.msra.mxu0 0.0
  %886 = vmatprep.subr.mxu0 0.0
  %887 = vmatpush1.msra.mxu0 0.0
  %888 = vmatprep.subr.mxu0 0.0
  %889 = vmatpush1.msra.mxu0 0.0
  %890 = vmatprep.subr.mxu0 0.0
  %891 = vmatpush1.msra.mxu0 0.0
  %892 = vmatprep.subr.mxu0 0.0
  %893 = vmatpush1.msra.mxu0 0.0
  %894 = vmatprep.subr.mxu0 0.0
  %895 = vmatpush1.msra.mxu0 0.0
  %896 = vmatprep.subr.mxu0 0.0
  %897 = vmatpush1.msra.mxu0 0.0
  %898 = vmatprep.subr.mxu0 0.0
  %899 = vmatpush1.msra.mxu0 0.0
  %900 = vmatprep.subr.mxu0 0.0
  %901 = vmatpush1.msra.mxu0 0.0
  %902 = vmatprep.subr.mxu0 0.0
  %903 = vmatpush1.msra.mxu0 0.0
  %904 = vmatprep.subr.mxu0 0.0
  %905 = vmatpush1.msra.mxu0 0.0
  %906 = vmatprep.subr.mxu0 0.0
  %907 = vmatpush1.msra.mxu0 0.0
  %908 = vmatprep.subr.mxu0 0.0
  %909 = vmatpush1.msra.mxu0 0.0
  %910 = vmatprep.subr.mxu0 0.0
  %911 = vmatpush1.msra.mxu0 0.0
  %912 = vmatprep.mubr.f32.mxu0 0.0
  %913 = vmatmul.mubr.f32.gmra.mrb[0].mxu0 %v841
  %v914 = vpop.f32.mrb[0].mxu0
  %v915 = vadd.f32 0.0, %v914
  %v916 = vpop.f32.mrb[0].mxu0
  %917 = vmatprep.mubr.f32.mxu0 0.0
  %918 = vmatmul.mubr.f32.gmra.mrb[0].mxu0 %v844
  %v919 = vpop.f32.mrb[0].mxu0
  %v920 = vadd.f32 0.0, %v919
  %v921 = vpop.f32.mrb[0].mxu0
  %922 = vdwg.mxu0
  %923 = vrot.lane.b32.xlu0 %v725, 96
  %v924 = vpop.permute.xlu0 %923
  %925 = vrot.lane.b32.xlu0 %v730, 96
  %v926 = vpop.permute.xlu0 %925
  %v927 = vsel %vm52, %v924, 0
  %v929 = vsel %vm52, %v926, 0
  %v932 = vsel %vm52, %v638, 0
  %934 = vmatprep.subr.mxu0 0.0
  %935 = vmatpush1.xpose.msra.mxu0 %v932
  %936 = vmatprep.subr.mxu0 0.0
  %937 = vmatpush1.xpose.msra.mxu0 0.0
  %938 = vmatprep.subr.mxu0 0.0
  %939 = vmatpush1.xpose.msra.mxu0 0.0
  %940 = vmatprep.subr.mxu0 0.0
  %941 = vmatpush1.xpose.msra.mxu0 0.0
  %942 = vmatprep.subr.mxu0 0.0
  %943 = vmatpush1.xpose.msra.mxu0 0.0
  %944 = vmatprep.subr.mxu0 0.0
  %945 = vmatpush1.xpose.msra.mxu0 0.0
  %946 = vmatprep.subr.mxu0 0.0
  %947 = vmatpush1.xpose.msra.mxu0 0.0
  %948 = vmatprep.subr.mxu0 0.0
  %949 = vmatpush1.xpose.msra.mxu0 0.0
  %950 = vmatprep.subr.mxu0 0.0
  %951 = vmatpush1.xpose.msra.mxu0 0.0
  %952 = vmatprep.subr.mxu0 0.0
  %953 = vmatpush1.xpose.msra.mxu0 0.0
  %954 = vmatprep.subr.mxu0 0.0
  %955 = vmatpush1.xpose.msra.mxu0 0.0
  %956 = vmatprep.subr.mxu0 0.0
  %957 = vmatpush1.xpose.msra.mxu0 0.0
  %958 = vmatprep.subr.mxu0 0.0
  %959 = vmatpush1.xpose.msra.mxu0 0.0
  %960 = vmatprep.subr.mxu0 0.0
  %961 = vmatpush1.xpose.msra.mxu0 0.0
  %962 = vmatprep.subr.mxu0 0.0
  %963 = vmatpush1.xpose.msra.mxu0 0.0
  %964 = vmatprep.subr.mxu0 0.0
  %965 = vmatpush1.xpose.msra.mxu0 0.0
  %966 = vmatprep.subr.mxu0 0.0
  %967 = vmatpush1.xpose.msra.mxu0 0.0
  %968 = vmatprep.subr.mxu0 0.0
  %969 = vmatpush1.xpose.msra.mxu0 0.0
  %970 = vmatprep.subr.mxu0 0.0
  %971 = vmatpush1.xpose.msra.mxu0 0.0
  %972 = vmatprep.subr.mxu0 0.0
  %973 = vmatpush1.xpose.msra.mxu0 0.0
  %974 = vmatprep.subr.mxu0 0.0
  %975 = vmatpush1.xpose.msra.mxu0 0.0
  %976 = vmatprep.subr.mxu0 0.0
  %977 = vmatpush1.xpose.msra.mxu0 0.0
  %978 = vmatprep.subr.mxu0 0.0
  %979 = vmatpush1.xpose.msra.mxu0 0.0
  %980 = vmatprep.subr.mxu0 0.0
  %981 = vmatpush1.xpose.msra.mxu0 0.0
  %982 = vmatprep.subr.mxu0 0.0
  %983 = vmatpush1.xpose.msra.mxu0 0.0
  %984 = vmatprep.subr.mxu0 0.0
  %985 = vmatpush1.xpose.msra.mxu0 0.0
  %986 = vmatprep.subr.mxu0 0.0
  %987 = vmatpush1.xpose.msra.mxu0 0.0
  %988 = vmatprep.subr.mxu0 0.0
  %989 = vmatpush1.xpose.msra.mxu0 0.0
  %990 = vmatprep.subr.mxu0 0.0
  %991 = vmatpush1.xpose.msra.mxu0 0.0
  %992 = vmatprep.subr.mxu0 0.0
  %993 = vmatpush1.xpose.msra.mxu0 0.0
  %994 = vmatprep.subr.mxu0 0.0
  %995 = vmatpush1.xpose.msra.mxu0 0.0
  %996 = vmatprep.subr.mxu0 0.0
  %997 = vmatpush1.xpose.msra.mxu0 0.0
  %998 = vmatprep.mubr.f32.mxu0 0.0
  %999 = vmatmul.mubr.f32.gmra.mrb[0].mxu0 %v927
  %v1000 = vpop.f32.mrb[0].mxu0
  %v1001 = vadd.f32 0.0, %v1000
  %v1002 = vpop.f32.mrb[0].mxu0
  %1003 = vmatprep.mubr.f32.mxu0 0.0
  %1004 = vmatmul.mubr.f32.gmra.mrb[0].mxu0 %v929
  %v1005 = vpop.f32.mrb[0].mxu0
  %v1006 = vadd.f32 0.0, %v1005
  %v1007 = vpop.f32.mrb[0].mxu0
  %1008 = vdwg.mxu0
  %v1009 = vsel %vm416, %v1001, -inf
  %1010 = vmax.xlane.f32.xlu0 %v1009
  %v1011 = vpop.xlane.xlu0 %1010
  %v1012 = vsel %vm420, %v1006, -inf
  %1013 = vmax.xlane.f32.xlu0 %v1012
  %v1014 = vpop.xlane.xlu0 %1013
  %v1015 = vsub.f32 %v1001, %v1011
  %v1016 = vsub.f32 %v1006, %v1014
  %v1017 = vmul.f32 %v1015, 1.442695
  %v1018 = vpow.pop %v1017
  %v1019 = vmul.f32 %v1016, 1.442695
  %v1020 = vpow.pop %v1019
  %v1021 = vsel %vm416, %v1018, 0.0
  %1022 = vadd.xlane.f32.xlu0 %v1021
  %v1023 = vpop.xlane.xlu0 %1022
  %v1024 = vsel %vm420, %v1020, 0.0
  %1025 = vadd.xlane.f32.xlu0 %v1024
  %v1026 = vpop.xlane.xlu0 %1025
  %v1027 = vrcp.pop %v1023
  %v1028 = vmul.f32 %v1018, %v1027
  %v1029 = vrcp.pop %v1026
  %v1030 = vmul.f32 %v1020, %v1029
  %v1032 = vsel %vm416, %v1028, 0
  %v1035 = vsel %vm416, %v1030, 0
  %1037 = vmatprep.subr.mxu0 0.0
  %1038 = vmatpush1.msra.mxu0 %v638
  %1039 = vmatprep.subr.mxu0 0.0
  %1040 = vmatpush1.msra.mxu0 0.0
  %1041 = vmatprep.subr.mxu0 0.0
  %1042 = vmatpush1.msra.mxu0 0.0
  %1043 = vmatprep.subr.mxu0 0.0
  %1044 = vmatpush1.msra.mxu0 0.0
  %1045 = vmatprep.subr.mxu0 0.0
  %1046 = vmatpush1.msra.mxu0 0.0
  %1047 = vmatprep.subr.mxu0 0.0
  %1048 = vmatpush1.msra.mxu0 0.0
  %1049 = vmatprep.subr.mxu0 0.0
  %1050 = vmatpush1.msra.mxu0 0.0
  %1051 = vmatprep.subr.mxu0 0.0
  %1052 = vmatpush1.msra.mxu0 0.0
  %1053 = vmatprep.subr.mxu0 0.0
  %1054 = vmatpush1.msra.mxu0 0.0
  %1055 = vmatprep.subr.mxu0 0.0
  %1056 = vmatpush1.msra.mxu0 0.0
  %1057 = vmatprep.subr.mxu0 0.0
  %1058 = vmatpush1.msra.mxu0 0.0
  %1059 = vmatprep.subr.mxu0 0.0
  %1060 = vmatpush1.msra.mxu0 0.0
  %1061 = vmatprep.subr.mxu0 0.0
  %1062 = vmatpush1.msra.mxu0 0.0
  %1063 = vmatprep.subr.mxu0 0.0
  %1064 = vmatpush1.msra.mxu0 0.0
  %1065 = vmatprep.subr.mxu0 0.0
  %1066 = vmatpush1.msra.mxu0 0.0
  %1067 = vmatprep.subr.mxu0 0.0
  %1068 = vmatpush1.msra.mxu0 0.0
  %1069 = vmatprep.subr.mxu0 0.0
  %1070 = vmatpush1.msra.mxu0 0.0
  %1071 = vmatprep.subr.mxu0 0.0
  %1072 = vmatpush1.msra.mxu0 0.0
  %1073 = vmatprep.subr.mxu0 0.0
  %1074 = vmatpush1.msra.mxu0 0.0
  %1075 = vmatprep.subr.mxu0 0.0
  %1076 = vmatpush1.msra.mxu0 0.0
  %1077 = vmatprep.subr.mxu0 0.0
  %1078 = vmatpush1.msra.mxu0 0.0
  %1079 = vmatprep.subr.mxu0 0.0
  %1080 = vmatpush1.msra.mxu0 0.0
  %1081 = vmatprep.subr.mxu0 0.0
  %1082 = vmatpush1.msra.mxu0 0.0
  %1083 = vmatprep.subr.mxu0 0.0
  %1084 = vmatpush1.msra.mxu0 0.0
  %1085 = vmatprep.subr.mxu0 0.0
  %1086 = vmatpush1.msra.mxu0 0.0
  %1087 = vmatprep.subr.mxu0 0.0
  %1088 = vmatpush1.msra.mxu0 0.0
  %1089 = vmatprep.subr.mxu0 0.0
  %1090 = vmatpush1.msra.mxu0 0.0
  %1091 = vmatprep.subr.mxu0 0.0
  %1092 = vmatpush1.msra.mxu0 0.0
  %1093 = vmatprep.subr.mxu0 0.0
  %1094 = vmatpush1.msra.mxu0 0.0
  %1095 = vmatprep.subr.mxu0 0.0
  %1096 = vmatpush1.msra.mxu0 0.0
  %1097 = vmatprep.subr.mxu0 0.0
  %1098 = vmatpush1.msra.mxu0 0.0
  %1099 = vmatprep.subr.mxu0 0.0
  %1100 = vmatpush1.msra.mxu0 0.0
  %1101 = vmatprep.mubr.f32.mxu0 0.0
  %1102 = vmatmul.mubr.f32.gmra.mrb[0].mxu0 %v1032
  %v1103 = vpop.f32.mrb[0].mxu0
  %v1104 = vadd.f32 0.0, %v1103
  %v1105 = vpop.f32.mrb[0].mxu0
  %1106 = vmatprep.mubr.f32.mxu0 0.0
  %1107 = vmatmul.mubr.f32.gmra.mrb[0].mxu0 %v1035
  %v1108 = vpop.f32.mrb[0].mxu0
  %v1109 = vadd.f32 0.0, %v1108
  %v1110 = vpop.f32.mrb[0].mxu0
  %1111 = vdwg.mxu0
  %1112 = vrot.lane.b32.xlu0 %v725, 32
  %v1113 = vpop.permute.xlu0 %1112
  %1114 = vrot.lane.b32.xlu0 %v730, 32
  %v1115 = vpop.permute.xlu0 %1114
  %1120 = vrot.lane.b32.xlu0 %v1104, 64
  %v1121 = vpop.permute.xlu0 %1120
  %1122 = vrot.lane.b32.xlu0 %v1109, 64
  %v1123 = vpop.permute.xlu0 %1122
  %1126 = vrot.lane.b32.xlu0 %v725, 64
  %v1127 = vpop.permute.xlu0 %1126
  %1128 = vrot.lane.b32.xlu0 %v730, 64
  %v1129 = vpop.permute.xlu0 %1128
  %v1132 = vsel %vm52, %v915, %v1113
  %v1133 = vsel %vm52, %v920, %v1115
  %v1134 = vsel %vm55, %v1132, %v1121
  %v1135 = vsel %vm55, %v1133, %v1123
  %v1136 = vsel %vm545, %v1134, %v1127
  %v1137 = vsel %vm545, %v1135, %v1129
  %1138 = vmatprep.subr.mxu0 0.0
  %1139 = vmatpush1.msra.mxu0 %v25
  %1140 = vmatprep.subr.mxu0 0.0
  %1141 = vmatpush1.msra.mxu0 %v26
  %1142 = vmatprep.subr.mxu0 0.0
  %1143 = vmatpush1.msra.mxu0 %v27
  %1144 = vmatprep.subr.mxu0 0.0
  %1145 = vmatpush1.msra.mxu0 %v28
  %1146 = vmatprep.subr.mxu0 0.0
  %1147 = vmatpush1.msra.mxu0 %v29
  %1148 = vmatprep.subr.mxu0 0.0
  %1149 = vmatpush1.msra.mxu0 %v30
  %1150 = vmatprep.subr.mxu0 0.0
  %1151 = vmatpush1.msra.mxu0 %v31
  %1152 = vmatprep.subr.mxu0 0.0
  %1153 = vmatpush1.msra.mxu0 %v32
  %1154 = vmatprep.subr.mxu0 0.0
  %1155 = vmatpush1.msra.mxu0 %v33
  %1156 = vmatprep.subr.mxu0 0.0
  %1157 = vmatpush1.msra.mxu0 %v34
  %1158 = vmatprep.subr.mxu0 0.0
  %1159 = vmatpush1.msra.mxu0 %v35
  %1160 = vmatprep.subr.mxu0 0.0
  %1161 = vmatpush1.msra.mxu0 %v36
  %1162 = vmatprep.subr.mxu0 0.0
  %1163 = vmatpush1.msra.mxu0 %v37
  %1164 = vmatprep.subr.mxu0 0.0
  %1165 = vmatpush1.msra.mxu0 %v38
  %1166 = vmatprep.subr.mxu0 0.0
  %1167 = vmatpush1.msra.mxu0 %v39
  %1168 = vmatprep.subr.mxu0 0.0
  %1169 = vmatpush1.msra.mxu0 %v40
  %1170 = vmatprep.subr.mxu0 0.0
  %1171 = vmatpush1.msra.mxu0 0.0
  %1172 = vmatprep.subr.mxu0 0.0
  %1173 = vmatpush1.msra.mxu0 0.0
  %1174 = vmatprep.subr.mxu0 0.0
  %1175 = vmatpush1.msra.mxu0 0.0
  %1176 = vmatprep.subr.mxu0 0.0
  %1177 = vmatpush1.msra.mxu0 0.0
  %1178 = vmatprep.subr.mxu0 0.0
  %1179 = vmatpush1.msra.mxu0 0.0
  %1180 = vmatprep.subr.mxu0 0.0
  %1181 = vmatpush1.msra.mxu0 0.0
  %1182 = vmatprep.subr.mxu0 0.0
  %1183 = vmatpush1.msra.mxu0 0.0
  %1184 = vmatprep.subr.mxu0 0.0
  %1185 = vmatpush1.msra.mxu0 0.0
  %1186 = vmatprep.subr.mxu0 0.0
  %1187 = vmatpush1.msra.mxu0 0.0
  %1188 = vmatprep.subr.mxu0 0.0
  %1189 = vmatpush1.msra.mxu0 0.0
  %1190 = vmatprep.subr.mxu0 0.0
  %1191 = vmatpush1.msra.mxu0 0.0
  %1192 = vmatprep.subr.mxu0 0.0
  %1193 = vmatpush1.msra.mxu0 0.0
  %1194 = vmatprep.subr.mxu0 0.0
  %1195 = vmatpush1.msra.mxu0 0.0
  %1196 = vmatprep.subr.mxu0 0.0
  %1197 = vmatpush1.msra.mxu0 0.0
  %1198 = vmatprep.subr.mxu0 0.0
  %1199 = vmatpush1.msra.mxu0 0.0
  %1200 = vmatprep.subr.mxu0 0.0
  %1201 = vmatpush1.msra.mxu0 0.0
  %1202 = vmatprep.mubr.f32.mxu0 0.0
  %1203 = vmatmul.mubr.f32.gmra.mrb[0].mxu0 %v1136
  %v1204 = vpop.f32.mrb[0].mxu0
  %v1205 = vadd.f32 0.0, %v1204
  %v1206 = vpop.f32.mrb[0].mxu0
  %1207 = vmatprep.mubr.f32.mxu0 0.0
  %1208 = vmatmul.mubr.f32.gmra.mrb[0].mxu0 %v1137
  %v1209 = vpop.f32.mrb[0].mxu0
  %v1210 = vadd.f32 0.0, %v1209
  %v1211 = vpop.f32.mrb[0].mxu0
  %1212 = vdwg.mxu0
  %v1213 = vtanh.pop %v1205
  %v1214 = vtanh.pop %v1210
  %1217 = vrot.lane.b32.xlu0 %v1213, 96
  %v1218 = vpop.permute.xlu0 %1217
  %1219 = vrot.lane.b32.xlu0 %v1214, 96
  %v1220 = vpop.permute.xlu0 %1219
  %s1223 = scalar_lea.vmem %s4, 24
  %1224 = vst.msk [vmem:[%s1223] sm:$0xff] %vm52, %v1213
  %1225 = vst.msk [vmem:[%s1223 + $0x8] sm:$0xff] %vm52, %v1218
  %1226 = vst.msk [vmem:[%s1223 + $0x10] sm:$0x3] %vm635, %v1220
  // Predicated region
  $region18: #{multi_encoder_forward.1} parent=0 // pred_check
    _
  $region19: #{multi_encoder_forward.1} parent=0 // pred_check_branch
    %1228 = sbr.rel (0) target = $region21
  $region20: #{multi_encoder_forward.1} parent=0 // pred_region
    _
  $region21: #{multi_encoder_forward.1} parent=0 // pred_fallthru
    _
  // Predicated region
  $region22: #{multi_encoder_forward.1} parent=0 // pred_check
    _
  $region23: #{multi_encoder_forward.1} parent=0 // pred_check_branch
    %1230 = sbr.rel (0) target = $region25
  $region24: #{multi_encoder_forward.1} parent=0 // pred_region
    _
  $region25: #{multi_encoder_forward.1} parent=0 // pred_fallthru
    _

</llo_original>
